<compile_context>
chip_gen: v7x
topology: tpu7x:2x2x1
jax: 0.10.0
libtpu: 0.0.40
codegen_flags: <defaults>
</compile_context>

<pallas_src>
import functools

import jax
import jax.numpy as jnp
from jax.experimental import pallas as pl
from jax.experimental.pallas import tpu as pltpu

LANES = 128
TARGET_TILE_BYTES = 2 * 1024 * 1024   # ~2 MiB per input per pipeline buffer


def _sublane_multiple(dtype):
    bits = jnp.dtype(dtype).itemsize * 8
    if bits >= 32:
        return 8
    if bits == 16:
        return 16
    return 32


def _focal_sum_kernel(x_ref, y_ref, out_ref, acc_ref, *, gamma, alpha, tile_rows):
    step = pl.program_id(1)

    # Zero the per-part vreg-shaped accumulator at the start of each part.
    @pl.when(step == 0)
    def _():
        acc_ref[...] = jnp.zeros_like(acc_ref)

    x = x_ref[...].astype(jnp.float32)   # "pred_prob" (treated as logits by BCEWithLogits)
    y = y_ref[...].astype(jnp.float32)   # "true"

    # nn.BCEWithLogitsLoss(reduction='none'), numerically stable form:
    #   max(x,0) - x*y + log1p(exp(-|x|))
    bce = jnp.maximum(x, 0.0) - x * y + jnp.log1p(jnp.exp(-jnp.abs(x)))

    # z = 1 - p_t = 1 - (y*x + (1-y)*(1-x)) = x + y - 2*x*y  ->  x*(1-2y) + y
    z = x * (1.0 - 2.0 * y) + y
    # alpha_factor = y*alpha + (1-y)*(1-alpha) = (1-alpha) + y*(2*alpha - 1)
    alpha_factor = (1.0 - alpha) + y * (2.0 * alpha - 1.0)

    # Keep common gammas off the generic pow path (exp+log on the EUP).
    if gamma == 0.0:
        loss = bce * alpha_factor
    else:
        if gamma == 0.5:
            mod = jnp.sqrt(z)
        elif gamma == 1.0:
            mod = z
        elif gamma == 1.5:
            mod = z * jnp.sqrt(z)
        elif gamma == 2.0:
            mod = z * z
        elif gamma == 3.0:
            mod = z * (z * z)
        else:
            mod = z ** gamma
        loss = bce * (alpha_factor * mod)

    # Elementwise fold into the (8,128) accumulator: vreg-aligned reshape,
    # reduction across vregs only (VPU adds, no XLU / scalar dep in hot loop).
    acc_ref[...] += loss.reshape(tile_rows // 8, 8, LANES).sum(axis=0)

    # Emit this part's per-lane partial sums once; final reduce is in XLA.
    @pl.when(step == pl.num_programs(1) - 1)
    def _():
        out_ref[0] = acc_ref[...]


def _focal_elementwise(x, y, gamma, alpha):
    """Plain-XLA per-element focal loss (used for the small unaligned tail)."""
    x = x.astype(jnp.float32)
    y = y.astype(jnp.float32)
    bce = jnp.maximum(x, 0.0) - x * y + jnp.log1p(jnp.exp(-jnp.abs(x)))
    z = x * (1.0 - 2.0 * y) + y
    alpha_factor = (1.0 - alpha) + y * (2.0 * alpha - 1.0)
    return bce * alpha_factor * (z ** gamma)


def focal_loss(pred_prob, true, gamma=1.5, alpha=0.25, reduction="mean"):
    """Pallas TPU focal loss. Matches FocalLoss(nn.BCEWithLogitsLoss()).forward."""
    assert pred_prob.shape == true.shape
    n_elem = pred_prob.size

    flat_x = jnp.ravel(pred_prob)
    flat_y = jnp.ravel(true)

    sub = max(_sublane_multiple(pred_prob.dtype), _sublane_multiple(true.dtype))
    itemsize = max(jnp.dtype(pred_prob.dtype).itemsize, jnp.dtype(true.dtype).itemsize)

    rows128 = n_elem // LANES                       # complete 128-lane rows
    max_tile_rows = max(sub, (TARGET_TILE_BYTES // (LANES * itemsize)) // sub * sub)
    tile_rows = min(max_tile_rows, (rows128 // sub) * sub)

    kernel_elems = 0
    total_kernel = jnp.float32(0.0)

    if tile_rows > 0:
        num_tiles = rows128 // tile_rows
        # Megacore split only when there are >= 2 real tiles; if the tile
        # count is odd, the extra tile joins the (small) XLA tail instead of
        # padding a dead part.
        parts = 2 if num_tiles >= 2 else 1
        num_tiles = (num_tiles // parts) * parts
        steps = num_tiles // parts
        kernel_rows = num_tiles * tile_rows
        kernel_elems = kernel_rows * LANES

        def to_slab(flat):
            if n_elem % LANES == 0:
                # Free bitcast: kernel only DMAs blocks [0, num_tiles) of this.
                return flat.reshape(rows128, LANES)
            # Ragged (<128-elem) remainder: prefix slice + reshape.
            # TODO(synk): this prefix slice may materialize a copy; inputs
            # whose size is a multiple of 128 take the zero-copy path above.
            return jax.lax.slice(flat, (0,), (kernel_rows * LANES,)).reshape(
                kernel_rows, LANES)

        in_block = pl.BlockSpec((tile_rows, LANES),
                                lambda p, i, _s=steps: (p * _s + i, 0))

        partials = pl.pallas_call(
            functools.partial(_focal_sum_kernel, gamma=gamma, alpha=alpha,
                              tile_rows=tile_rows),
            out_shape=jax.ShapeDtypeStruct((parts, 8, LANES), jnp.float32),
            grid_spec=pltpu.PrefetchScalarGridSpec(
                num_scalar_prefetch=0,
                grid=(parts, steps),
                in_specs=[in_block, in_block],
                out_specs=pl.BlockSpec((1, 8, LANES), lambda p, i: (p, 0, 0)),
                scratch_shapes=[pltpu.VMEM((8, LANES), jnp.float32)],
            ),
            compiler_params=pltpu.CompilerParams(
                dimension_semantics=("parallel", "arbitrary")),
        )(to_slab(flat_x), to_slab(flat_y))

        total_kernel = jnp.sum(partials)

    # Small tail (rows not covered by whole tiles + any sub-128 remainder)
    # reduced in plain XLA and added to the kernel partials.
    if kernel_elems < n_elem:
        tx = jax.lax.slice(flat_x, (kernel_elems,), (n_elem,))
        ty = jax.lax.slice(flat_y, (kernel_elems,), (n_elem,))
        tail_sum = jnp.sum(_focal_elementwise(tx, ty, gamma, alpha))
    else:
        tail_sum = jnp.float32(0.0)

    total = total_kernel + tail_sum

    if reduction == "mean":
        return total / jnp.float32(n_elem)
    elif reduction == "sum":
        return total
    else:
        # TODO(synk): reduction='none' would need an elementwise output slab;
        # default nn.BCEWithLogitsLoss().reduction is 'mean', which is what we use.
        raise NotImplementedError("reduction='none' not implemented")


def focal_loss_ref(pred_prob, true, gamma=1.5, alpha=0.25):
    """Pure-JAX reference mirroring the PyTorch forward (mean reduction)."""
    x = pred_prob.astype(jnp.float32)
    y = true.astype(jnp.float32)
    bce = jnp.maximum(x, 0.0) - x * y + jnp.log1p(jnp.exp(-jnp.abs(x)))
    p_t = y * x + (1.0 - y) * (1.0 - x)
    alpha_factor = y * alpha + (1.0 - y) * (1.0 - alpha)
    modulating_factor = (1.0 - p_t) ** gamma
    return jnp.mean(bce * alpha_factor * modulating_factor)


if __name__ == "__main__":
    key = jax.random.PRNGKey(0)
    k1, k2 = jax.random.split(key)

    # Small NCHW-like shapes (detection-style logits/targets).
    shape = (2, 4, 16, 16)
    # Keep pred_prob in (0,1) so (1 - p_t)**1.5 stays real (matches typical usage
    # of this module, which feeds the same tensor to BCEWithLogits and to p_t).
    pred_prob = jax.random.uniform(k1, shape, dtype=jnp.float32, minval=0.01, maxval=0.99)
    true = (jax.random.uniform(k2, shape) > 0.5).astype(jnp.float32)

    out = focal_loss(pred_prob, true, gamma=1.5, alpha=0.25, reduction="mean")
    out = jax.block_until_ready(out)

    ref = focal_loss_ref(pred_prob, true, gamma=1.5, alpha=0.25)
    assert jnp.allclose(out, ref, rtol=1e-5, atol=1e-6), (out, ref)

    print("KERNEL_OK")
</pallas_src>

<mosaic_0001>
module attributes {stable_mosaic.version = 11 : i64} {
  func.func @_focal_sum_kernel(%arg0: i32, %arg1: i32, %arg2: memref<16x128xf32, #tpu.memory_space<vmem>>, %arg3: memref<16x128xf32, #tpu.memory_space<vmem>>, %arg4: memref<1x8x128xf32, #tpu.memory_space<vmem>>, %arg5: memref<8x128xf32, #tpu.memory_space<vmem>>) attributes {dimension_semantics = [#tpu.dimension_semantics<parallel>, #tpu.dimension_semantics<arbitrary>], iteration_bounds = array<i64: 1, 1>, scalar_prefetch = 0 : i64, scratch_operands = 1 : i64, tpu.core_type = #tpu.core_type<tc>, window_params = [{transform_indices = @transform_0, window_bounds = array<i64: 16, 128>}, {transform_indices = @transform_1, window_bounds = array<i64: 16, 128>}, {transform_indices = @transform_2, window_bounds = array<i64: 1, 8, 128>}]} {
    %c0_i32 = arith.constant 0 : i32
    %0 = arith.cmpi eq, %arg1, %c0_i32 : i32
    %1 = arith.extui %0 : i1 to i32
    %c0_i32_0 = arith.constant 0 : i32
    %2 = arith.cmpi ne, %1, %c0_i32_0 : i32
    scf.if %2 {
      %cst_16 = arith.constant 0.000000e+00 : f32
      %37 = vector.broadcast %cst_16 : f32 to vector<8x128xf32>
      %c0_17 = arith.constant 0 : index
      %c0_18 = arith.constant 0 : index
      %38 = vector.load %arg5[%c0_17, %c0_18] : memref<8x128xf32, #tpu.memory_space<vmem>>, vector<8x128xf32>
      tpu.vector_store %arg5[%c0_17, %c0_18], %37 {strides = array<i32>} : memref<8x128xf32, #tpu.memory_space<vmem>>, vector<8x128xf32>,
    } else {
    }
    %c0 = arith.constant 0 : index
    %c0_1 = arith.constant 0 : index
    %3 = vector.load %arg2[%c0, %c0_1] : memref<16x128xf32, #tpu.memory_space<vmem>>, vector<16x128xf32>
    %c0_2 = arith.constant 0 : index
    %c0_3 = arith.constant 0 : index
    %4 = vector.load %arg3[%c0_2, %c0_3] : memref<16x128xf32, #tpu.memory_space<vmem>>, vector<16x128xf32>
    %cst = arith.constant 0.000000e+00 : f32
    %5 = vector.broadcast %cst : f32 to vector<16x128xf32>
    %6 = arith.maximumf %3, %5 : vector<16x128xf32>
    %7 = arith.mulf %3, %4 : vector<16x128xf32>
    %8 = arith.subf %6, %7 : vector<16x128xf32>
    %9 = math.absf %3 : vector<16x128xf32>
    %cst_4 = arith.constant 0.000000e+00 : f32
    %10 = vector.broadcast %cst_4 : f32 to vector<16x128xf32>
    %11 = arith.subf %10, %9 : vector<16x128xf32>
    %12 = math.exp %11 : vector<16x128xf32>
    %13 = math.log1p %12 : vector<16x128xf32>
    %14 = arith.addf %8, %13 : vector<16x128xf32>
    %cst_5 = arith.constant 2.000000e+00 : f32
    %15 = vector.broadcast %cst_5 : f32 to vector<16x128xf32>
    %16 = arith.mulf %15, %4 : vector<16x128xf32>
    %cst_6 = arith.constant 1.000000e+00 : f32
    %17 = vector.broadcast %cst_6 : f32 to vector<16x128xf32>
    %18 = arith.subf %17, %16 : vector<16x128xf32>
    %19 = arith.mulf %3, %18 : vector<16x128xf32>
    %20 = arith.addf %19, %4 : vector<16x128xf32>
    %cst_7 = arith.constant -5.000000e-01 : f32
    %21 = vector.broadcast %cst_7 : f32 to vector<16x128xf32>
    %22 = arith.mulf %4, %21 : vector<16x128xf32>
    %cst_8 = arith.constant 7.500000e-01 : f32
    %23 = vector.broadcast %cst_8 : f32 to vector<16x128xf32>
    %24 = arith.addf %23, %22 : vector<16x128xf32>
    %25 = math.sqrt %20 : vector<16x128xf32>
    %26 = arith.mulf %20, %25 : vector<16x128xf32>
    %27 = arith.mulf %24, %26 : vector<16x128xf32>
    %28 = arith.mulf %14, %27 : vector<16x128xf32>
    %c0_9 = arith.constant 0 : index
    %c0_10 = arith.constant 0 : index
    %29 = vector.load %arg5[%c0_9, %c0_10] : memref<8x128xf32, #tpu.memory_space<vmem>>, vector<8x128xf32>
    %30 = vector.shape_cast %28 : vector<16x128xf32> to vector<2x8x128xf32>
    %cst_11 = arith.constant dense<0.000000e+00> : vector<8x128xf32>
    %31 = vector.multi_reduction <add>, %30, %cst_11 [0] : vector<2x8x128xf32> to vector<8x128xf32>
    %32 = arith.addf %29, %31 : vector<8x128xf32>
    %c0_12 = arith.constant 0 : index
    %c0_13 = arith.constant 0 : index
    %33 = vector.load %arg5[%c0_12, %c0_13] : memref<8x128xf32, #tpu.memory_space<vmem>>, vector<8x128xf32>
    tpu.vector_store %arg5[%c0_12, %c0_13], %32 {strides = array<i32>} : memref<8x128xf32, #tpu.memory_space<vmem>>, vector<8x128xf32>,
    %c0_i32_14 = arith.constant 0 : i32
    %34 = arith.cmpi eq, %arg1, %c0_i32_14 : i32
    %35 = arith.extui %34 : i1 to i32
    %c0_i32_15 = arith.constant 0 : i32
    %36 = arith.cmpi ne, %35, %c0_i32_15 : i32
    scf.if %36 {
      %c0_16 = arith.constant 0 : index
      %c0_17 = arith.constant 0 : index
      %37 = vector.load %arg5[%c0_16, %c0_17] : memref<8x128xf32, #tpu.memory_space<vmem>>, vector<8x128xf32>
      %c0_18 = arith.constant 0 : index
      %c0_19 = arith.constant 0 : index
      %c0_20 = arith.constant 0 : index
      %38 = vector.load %arg4[%c0_18, %c0_19, %c0_20] : memref<1x8x128xf32, #tpu.memory_space<vmem>>, vector<1x8x128xf32>
      %39 = vector.shape_cast %38 : vector<1x8x128xf32> to vector<8x128xf32>
      %40 = vector.shape_cast %37 : vector<8x128xf32> to vector<1x8x128xf32>
      tpu.vector_store %arg4[%c0_18, %c0_19, %c0_20], %40 {strides = array<i32>} : memref<1x8x128xf32, #tpu.memory_space<vmem>>, vector<1x8x128xf32>,
    } else {
    }
    return
  }
  func.func @transform_0(%arg0: i32, %arg1: i32) -> (i32, i32) {
    %c1_i32 = arith.constant 1 : i32
    %0 = arith.muli %arg0, %c1_i32 : i32
    %1 = arith.addi %0, %arg1 : i32
    %c0_i32 = arith.constant 0 : i32
    %c0_i32_0 = arith.constant 0 : i32
    return %1, %c0_i32 : i32, i32
  }
  func.func @transform_1(%arg0: i32, %arg1: i32) -> (i32, i32) {
    %c1_i32 = arith.constant 1 : i32
    %0 = arith.muli %arg0, %c1_i32 : i32
    %1 = arith.addi %0, %arg1 : i32
    %c0_i32 = arith.constant 0 : i32
    %c0_i32_0 = arith.constant 0 : i32
    return %1, %c0_i32 : i32, i32
  }
  func.func @transform_2(%arg0: i32, %arg1: i32) -> (i32, i32, i32) {
    %c0_i32 = arith.constant 0 : i32
    %c0_i32_0 = arith.constant 0 : i32
    %c0_i32_1 = arith.constant 0 : i32
    return %arg0, %c0_i32, %c0_i32_0 : i32, i32, i32
  }
}

</mosaic_0001>

<llo_original>
// kernel: tpu_custom_call.1
$region0: #{tpu_custom_call.1}
  #allocation0 [shape = 'u32[]', space=smem, size = 0x4, offset = 0x4, fixed_abs, tag = 'smem constant byte address 0x4 - core index']
  #allocation1 [shape = 'u32[144,128]{1,0:T(1,128)}', space=vmem, size = 0x12000, scoped, tag = 'internal scratch']
  #allocation2 [shape = 'f32[8,128]{1,0:T(8,128)}', space=vmem, size = 0x1000, scoped, tag = 'scratch operand']
  %s0 = inlined_call_operand.hbm [shape: f32[16,128], index: 0, kind: input, shape index: {}]
  %s1 = inlined_call_operand.hbm [shape: f32[16,128], index: 1, kind: input, shape index: {}]
  %s2 = inlined_call_operand.hbm [shape: f32[1,8,128], index: 2, kind: output, shape index: {}]
  %s3 = sld [smem:[#allocation0]]
  $region34: #{tpu_custom_call.1} parent=0
    _
  %s5 = ssub.s32 1, %s3
  %s6 = scalar_select 0, %s5, %s3
  $region1: #{tpu_custom_call.1} parent=0
    #allocation3 [shape = 'u8[8192]{0}', space=vmem, size = 0x2000, scoped, tag = 'input window, operand 0, single buffered']
    #allocation4 [shape = 's32[1]{0}', space=sflag, size = 0x4, scoped, tag = 'scoped memory for tpu_custom_call.1']
    #allocation5 [shape = 's32[1]{0}', space=sflag, size = 0x4, scoped, tag = 'scoped memory for tpu_custom_call.1']
    #allocation6 [shape = 'u8[8192]{0}', space=vmem, size = 0x2000, scoped, tag = 'input window, operand 1, single buffered']
    #allocation7 [shape = 's32[1]{0}', space=sflag, size = 0x4, scoped, tag = 'scoped memory for tpu_custom_call.1']
    #allocation8 [shape = 'u8[4096]{0}', space=vmem, size = 0x1000, scoped, tag = 'output window, operand 0, single buffered']
    %7 = vsyncpa [#allocation4], 0
    %8 = vsyncpa [#allocation7], 0
    %9 = vsyncpa [#allocation5], 0
    // Predicated region
    $region2: #{tpu_custom_call.1} parent=1 // pred_check
      _
    $region3: #{tpu_custom_call.1} parent=1 // pred_check_branch
      %11 = sbr.rel (0) target = $region5
    $region4: #{tpu_custom_call.1} parent=1 // pred_region
      %s12 = sadd.s32 0, 0
      %s13 = smul.u32 2, %s12
      %s15 = ssub.s32 256, 256
      %16 = vsyncadd [#allocation4], %s15
      %s17 = smul.addr %s13, 128
      %s18 = scalar_lea.hbm %s0, %s17
      %s19 = sshll.u32 [#allocation3], 4
      %s20 = int_to_ptr.vmem [resolvable:$true] %s19
      %25 = dma.hbm_to_vmem [thread:$0]  %s18, 256, %s20, [#allocation4], 128, 128, 8
    $region5: #{tpu_custom_call.1} parent=1 // pred_fallthru
      _
    // Predicated region
    $region6: #{tpu_custom_call.1} parent=1 // pred_check
      _
    $region7: #{tpu_custom_call.1} parent=1 // pred_check_branch
      %27 = sbr.rel (0) target = $region9
    $region8: #{tpu_custom_call.1} parent=1 // pred_region
      %s28 = sadd.s32 0, 0
      %s29 = smul.u32 2, %s28
      %s31 = ssub.s32 256, 256
      %32 = vsyncadd [#allocation7], %s31
      %s33 = smul.addr %s29, 128
      %s34 = scalar_lea.hbm %s1, %s33
      %s35 = sshll.u32 [#allocation6], 4
      %s36 = int_to_ptr.vmem [resolvable:$true] %s35
      %41 = dma.hbm_to_vmem [thread:$0]  %s34, 256, %s36, [#allocation7], 128, 128, 8
    $region9: #{tpu_custom_call.1} parent=1 // pred_fallthru
      _
    // Predicated region
    $region10: #{tpu_custom_call.1} parent=1 // pred_check
      _
    $region11: #{tpu_custom_call.1} parent=1 // pred_check_branch
      %43 = sbr.rel (0) target = $region13
    $region12: #{tpu_custom_call.1} parent=1 // pred_region
      %44 = dma.done [#allocation4], 256
    $region13: #{tpu_custom_call.1} parent=1 // pred_fallthru
      _
    // Predicated region
    $region14: #{tpu_custom_call.1} parent=1 // pred_check
      _
    $region15: #{tpu_custom_call.1} parent=1 // pred_check_branch
      %46 = sbr.rel (0) target = $region17
    $region16: #{tpu_custom_call.1} parent=1 // pred_region
      %47 = dma.done [#allocation7], 256
    $region17: #{tpu_custom_call.1} parent=1 // pred_fallthru
      _
    %s48 = sadd.s32 0, 0
    %s49 = smul.u32 2, %s48
    %s50 = sadd.s32 0, 0
    %s51 = smul.u32 2, %s50
    %p52 = scmp.eq.s32.totalorder 0, 0
    // Predicated region
    $region18: #{tpu_custom_call.1} parent=1 // pred_check
      %p53 = pneg %p52
    $region19: #{tpu_custom_call.1} parent=1 // pred_check_branch
      %55 = sbr.rel (%p53) target = $region21
    $region20: #{tpu_custom_call.1} parent=1 // pred_region
      %56 = vst [vmem:[#allocation2] sm:$0xff] 0.0
    $region21: #{tpu_custom_call.1} parent=1 // pred_fallthru
      _
    %v57 = vld [vmem:[#allocation3] sm:$0xff]
    %v58 = vld [vmem:[#allocation3 + $0x8] sm:$0xff]
    %v59 = vld [vmem:[#allocation6] sm:$0xff]
    %v60 = vld [vmem:[#allocation6 + $0x8] sm:$0xff]
    %v61 = vmax.f32 %v57, 0.0
    %v62 = vmax.f32 %v58, 0.0
    %v63 = vmul.f32 %v57, %v59
    %v64 = vmul.f32 %v58, %v60
    %v65 = vsub.f32 %v61, %v63
    %v66 = vsub.f32 %v62, %v64
    %v67 = vand.u32 2147483647, %v57
    %v68 = vand.u32 2147483647, %v58
    %v69 = vsub.f32 0.0, %v67
    %v70 = vsub.f32 0.0, %v68
    %v71 = vmul.f32 %v69, 1.442695
    %v72 = vpow.pop %v71
    %v73 = vmul.f32 %v70, 1.442695
    %v74 = vpow.pop %v73
    %v75 = vadd.f32 %v72, 1.0
    %v76 = vlog2.pop %v75
    %v77 = vmul.f32 %v76, 0.6931472
    %v78 = vmul.f32 -0.5, %v72
    %v79 = vadd.f32 %v78, 1.0
    %v80 = vmul.f32 %v79, %v72
    %v81 = vand.u32 2147483647, %v72
    %vm82 = vcmp.lt.f32.partialorder %v81, 0.0004427343
    %v83 = vsel %vm82, %v80, %v77
    %v84 = vadd.f32 %v74, 1.0
    %v85 = vlog2.pop %v84
    %v86 = vmul.f32 %v85, 0.6931472
    %v87 = vmul.f32 -0.5, %v74
    %v88 = vadd.f32 %v87, 1.0
    %v89 = vmul.f32 %v88, %v74
    %v90 = vand.u32 2147483647, %v74
    %vm91 = vcmp.lt.f32.partialorder %v90, 0.0004427343
    %v92 = vsel %vm91, %v89, %v86
    %v93 = vadd.f32 %v65, %v83
    %v94 = vadd.f32 %v66, %v92
    %v95 = vmul.f32 %v59, 2.0
    %v96 = vmul.f32 %v60, 2.0
    %v97 = vsub.f32 1.0, %v95
    %v98 = vsub.f32 1.0, %v96
    %v99 = vmul.f32 %v57, %v97
    %v100 = vmul.f32 %v58, %v98
    %v101 = vadd.f32 %v99, %v59
    %v102 = vadd.f32 %v100, %v60
    %v103 = vmul.f32 %v59, -0.5
    %v104 = vmul.f32 %v60, -0.5
    %v105 = vadd.f32 %v103, 0.75
    %v106 = vadd.f32 %v104, 0.75
    %v107 = vrsqrt.pop %v101
    %v108 = vmul.f32 %v101, %v107
    %vm109 = vcmp.eq.f32.partialorder %v101, inf
    %v110 = vsel %vm109, %v101, %v108
    %vm111 = vcmp.eq.f32.partialorder %v101, 0.0
    %v112 = vand.u32 %v101, 2147483648
    %v113 = vsel %vm111, %v112, %v110
    %v114 = vrsqrt.pop %v102
    %v115 = vmul.f32 %v102, %v114
    %vm116 = vcmp.eq.f32.partialorder %v102, inf
    %v117 = vsel %vm116, %v102, %v115
    %vm118 = vcmp.eq.f32.partialorder %v102, 0.0
    %v119 = vand.u32 %v102, 2147483648
    %v120 = vsel %vm118, %v119, %v117
    %v121 = vmul.f32 %v101, %v113
    %v122 = vmul.f32 %v102, %v120
    %v123 = vmul.f32 %v105, %v121
    %v124 = vmul.f32 %v106, %v122
    %v125 = vmul.f32 %v93, %v123
    %v126 = vmul.f32 %v94, %v124
    %v127 = vld [vmem:[#allocation2] sm:$0xff]
    %v128 = vadd.f32 %v125, %v126
    %v129 = vadd.f32 %v127, %v128
    %130 = vst [vmem:[#allocation2] sm:$0xff] %v129
    // Predicated region
    $region22: #{tpu_custom_call.1} parent=1 // pred_check
      %p131 = pneg %p52
    $region23: #{tpu_custom_call.1} parent=1 // pred_check_branch
      %133 = sbr.rel (%p131) target = $region25
    $region24: #{tpu_custom_call.1} parent=1 // pred_region
      %v134 = vld [vmem:[#allocation2] sm:$0xff]
      %135 = vst [vmem:[#allocation8] sm:$0xff] %v134
    $region25: #{tpu_custom_call.1} parent=1 // pred_fallthru
      _
    // Predicated region
    $region26: #{tpu_custom_call.1} parent=1 // pred_check
      _
    $region27: #{tpu_custom_call.1} parent=1 // pred_check_branch
      %137 = sbr.rel (0) target = $region29
    $region28: #{tpu_custom_call.1} parent=1 // pred_region
      %s139 = ssub.s32 128, 128
      %140 = vsyncadd [#allocation5], %s139
      %s142 = sshll.u32 [#allocation8], 4
      %s143 = int_to_ptr.vmem [resolvable:$true] %s142
      %145 = dma.vmem_to_hbm [thread:$0]  %s143, 128, %s2, [#allocation5]
    $region29: #{tpu_custom_call.1} parent=1 // pred_fallthru
      _
    // Predicated region
    $region30: #{tpu_custom_call.1} parent=1 // pred_check
      _
    $region31: #{tpu_custom_call.1} parent=1 // pred_check_branch
      %147 = sbr.rel (0) target = $region33
    $region32: #{tpu_custom_call.1} parent=1 // pred_region
      %148 = dma.done [#allocation5], 128
    $region33: #{tpu_custom_call.1} parent=1 // pred_fallthru
      _
    %149 = vsyncpa [#allocation4], 1
    %150 = vsyncpa [#allocation7], 1
    %151 = vsyncpa [#allocation5], 1

</llo_original>
